<compile_context>
chip_gen: v7x
topology: tpu7x:2x2x1
jax: 0.10.0
libtpu: 0.0.40
codegen_flags: <defaults>
</compile_context>

<pallas_src>
import jax
import jax.numpy as jnp
from jax.experimental import pallas as pl
from jax.experimental.pallas import tpu as pltpu

_INV_SQRT2 = 0.7071067811865476


def _cdiv(a: int, b: int) -> int:
    return -(-a // b)


def _round_up(x: int, m: int) -> int:
    return _cdiv(x, m) * m


def _balanced_tile(dim: int, max_tile: int, align: int) -> int:
    """Largest tile <= max_tile (aligned) that splits `dim` with minimal padding."""
    dim_r = _round_up(dim, align)
    if dim_r <= max_tile:
        return dim_r
    nblocks = _cdiv(dim_r, max_tile)
    return _round_up(_cdiv(dim, nblocks), align)


def dense_layer_kernel(x_ref, w_ref, scale_ref, shift_ref, o_ref):
    # f32 output tile is VMEM-resident across the k axis (out index_map ignores k),
    # so it doubles as the accumulator: zero on k==0, accumulate, epilogue on last k.
    @pl.when(pl.program_id(2) == 0)
    def _():
        o_ref[...] = jnp.zeros_like(o_ref)

    o_ref[...] += jnp.dot(x_ref[...], w_ref[...],
                          preferred_element_type=jnp.float32)

    @pl.when(pl.program_id(2) == pl.num_programs(2) - 1)
    def _():
        # Folded bias + BN affine, then exact (erf) GELU. Dropout(eval) = identity.
        y = o_ref[...] * scale_ref[...] + shift_ref[...]
        o_ref[...] = 0.5 * y * (1.0 + jax.lax.erf(y * _INV_SQRT2))


def dense_layer(x, w, b, gamma, beta, running_mean, running_var, eps=1e-5,
                tm_max=512, tn_max=512, tk_max=1024, use_bf16=False):
    """Fused Linear + BatchNorm1d(eval) + Dropout(eval) + GELU.

    x: (B, Fin) float32
    w: (Fin, Fout) float32   (transposed vs. PyTorch nn.Linear storage)
    b, gamma, beta, running_mean, running_var: (Fout,) float32
    use_bf16: cast x/w MXU operands to bfloat16 (f32 accumulation / f32 epilogue).
    returns: (B, Fout) float32
    """
    B, Fin = x.shape
    Kw, Fout = w.shape
    assert Kw == Fin, "weight must be (in_features, out_features)"

    compute_dtype = jnp.bfloat16 if use_bf16 else jnp.float32
    itemsize = 2 if use_bf16 else 4
    m_align = 16 if use_bf16 else 8  # respect bf16 sublane packing

    # Fold Linear bias + eval-mode BatchNorm into a per-output-feature affine.
    scale = (gamma / jnp.sqrt(running_var.astype(jnp.float32) + eps)).astype(jnp.float32)
    shift = (beta + (b - running_mean) * scale).astype(jnp.float32)

    # Balanced tile sizes: M tile multiple of m_align, N/K multiples of 128 (lanes).
    tm = _balanced_tile(B, tm_max, m_align)
    tn = _balanced_tile(Fout, tn_max, 128)
    tk = _balanced_tile(Fin, tk_max, 128)
    Bp = _round_up(B, tm)
    Fp = _round_up(Fout, tn)
    Kp = _round_up(Fin, tk)

    # Guarantee >= 2 blocks along a parallel axis when the shape allows it
    # (v7x has 2 TensorCores; a (1,1,K) grid serializes on one of them).
    if (Bp // tm) * (Fp // tn) < 2:
        if Fp >= 2 * 128:
            tn = _round_up(_cdiv(Fout, 2), 128)
            Fp = _round_up(Fout, tn)
        elif Bp >= 2 * m_align:
            tm = _round_up(_cdiv(B, 2), m_align)
            Bp = _round_up(B, tm)

    # Pad/cast operands only when needed (no extra HBM pass for tile-aligned dims).
    if (B, Fin) == (Bp, Kp) and x.dtype == compute_dtype:
        xp = x
    elif (B, Fin) == (Bp, Kp):
        xp = x.astype(compute_dtype)
    else:
        xp = jnp.zeros((Bp, Kp), compute_dtype).at[:B, :Fin].set(x.astype(compute_dtype))

    if (Fin, Fout) == (Kp, Fp) and w.dtype == compute_dtype:
        wp = w
    elif (Fin, Fout) == (Kp, Fp):
        wp = w.astype(compute_dtype)
    else:
        wp = jnp.zeros((Kp, Fp), compute_dtype).at[:Fin, :Fout].set(w.astype(compute_dtype))

    if Fout == Fp:
        scale_p = scale.reshape(1, Fp)
        shift_p = shift.reshape(1, Fp)
    else:
        scale_p = jnp.zeros((1, Fp), jnp.float32).at[0, :Fout].set(scale)
        shift_p = jnp.zeros((1, Fp), jnp.float32).at[0, :Fout].set(shift)

    grid = (Bp // tm, Fp // tn, Kp // tk)

    # VMEM limit sized from the actual double-buffered tiles (+ headroom), capped
    # well under v7x's 64 MiB per-TensorCore budget.
    tile_bytes = (2 * tm * tk * itemsize      # x tiles (double-buffered)
                  + 2 * tk * tn * itemsize    # w tiles
                  + 2 * tm * tn * 4           # output/accumulator tile
                  + 4 * tn * 4)               # scale + shift tiles
    vmem_limit = int(min(max(2 * tile_bytes, 32 << 20), 48 << 20))

    cost = pl.CostEstimate(
        flops=2 * Bp * Fp * Kp,
        transcendentals=Bp * Fp,
        bytes_accessed=(Bp * Kp * itemsize * (Fp // tn)
                        + Kp * Fp * itemsize * (Bp // tm)
                        + Bp * Fp * 4
                        + 2 * Fp * 4),
    )

    out_p = pl.pallas_call(
        dense_layer_kernel,
        out_shape=jax.ShapeDtypeStruct((Bp, Fp), jnp.float32),
        grid_spec=pltpu.PrefetchScalarGridSpec(
            num_scalar_prefetch=0,
            grid=grid,
            in_specs=[
                pl.BlockSpec((tm, tk), lambda i, j, k: (i, k)),   # x tile
                pl.BlockSpec((tk, tn), lambda i, j, k: (k, j)),   # w tile
                pl.BlockSpec((1, tn), lambda i, j, k: (0, j)),    # folded scale
                pl.BlockSpec((1, tn), lambda i, j, k: (0, j)),    # folded shift
            ],
            out_specs=pl.BlockSpec((tm, tn), lambda i, j, k: (i, j)),
        ),
        compiler_params=pltpu.CompilerParams(
            dimension_semantics=("parallel", "parallel", "arbitrary"),
            vmem_limit_bytes=vmem_limit,
        ),
        cost_estimate=cost,
    )(xp, wp, scale_p, shift_p)

    if (Bp, Fp) == (B, Fout):
        return out_p
    return out_p[:B, :Fout]


if __name__ == "__main__":
    # Small shapes consistent with DenseLayer: batch=8, in_features=32, out_features=64.
    B, Fin, Fout = 8, 32, 64

    key = jax.random.PRNGKey(0)
    kx, kw, kb, kg, kbeta, km, kv = jax.random.split(key, 7)

    x = jax.random.normal(kx, (B, Fin), dtype=jnp.float32)

    # PyTorch-like uniform init bounds for the Linear layer.
    bound = 1.0 / (Fin ** 0.5)
    w = jax.random.uniform(kw, (Fin, Fout), jnp.float32, -bound, bound)
    b = jax.random.uniform(kb, (Fout,), jnp.float32, -bound, bound)

    # BatchNorm1d parameters / running stats (deterministic, non-trivial).
    gamma = 1.0 + 0.1 * jax.random.normal(kg, (Fout,), dtype=jnp.float32)
    beta = 0.1 * jax.random.normal(kbeta, (Fout,), dtype=jnp.float32)
    running_mean = 0.1 * jax.random.normal(km, (Fout,), dtype=jnp.float32)
    running_var = 1.0 + 0.1 * jax.random.uniform(kv, (Fout,), dtype=jnp.float32)

    # Plain-JAX reference (eval-mode semantics of the PyTorch module).
    z = x @ w + b
    y = (z - running_mean) / jnp.sqrt(running_var + 1e-5) * gamma + beta
    ref = 0.5 * y * (1.0 + jax.lax.erf(y * _INV_SQRT2))

    # f32 MXU path: exact to 1e-5.
    out = dense_layer(x, w, b, gamma, beta, running_mean, running_var)
    out = jax.block_until_ready(out)
    assert out.shape == (B, Fout)
    assert jnp.allclose(out, ref, atol=1e-5, rtol=1e-5), "f32 path mismatch vs reference"

    # bf16 MXU path (the big perf lever on v5e/v6e/v7x): looser tolerance.
    out_bf16 = dense_layer(x, w, b, gamma, beta, running_mean, running_var, use_bf16=True)
    out_bf16 = jax.block_until_ready(out_bf16)
    assert out_bf16.shape == (B, Fout)
    assert jnp.allclose(out_bf16, ref, atol=3e-2, rtol=3e-2), "bf16 path mismatch vs reference"

    print("KERNEL_OK")
</pallas_src>

<mosaic_0001>
module attributes {stable_mosaic.version = 11 : i64} {
  func.func @dense_layer_kernel(%arg0: i32, %arg1: i32, %arg2: i32, %arg3: memref<8x128xf32, #tpu.memory_space<vmem>>, %arg4: memref<128x128xf32, #tpu.memory_space<vmem>>, %arg5: memref<1x128xf32, #tpu.memory_space<vmem>>, %arg6: memref<1x128xf32, #tpu.memory_space<vmem>>, %arg7: memref<8x128xf32, #tpu.memory_space<vmem>>) attributes {dimension_semantics = [#tpu.dimension_semantics<parallel>, #tpu.dimension_semantics<parallel>, #tpu.dimension_semantics<arbitrary>], iteration_bounds = array<i64: 1, 1, 1>, scalar_prefetch = 0 : i64, scratch_operands = 0 : i64, tpu.core_type = #tpu.core_type<tc>, window_params = [{transform_indices = @transform_0, window_bounds = array<i64: 8, 128>}, {transform_indices = @transform_1, window_bounds = array<i64: 128, 128>}, {transform_indices = @transform_2, window_bounds = array<i64: 1, 128>}, {transform_indices = @transform_3, window_bounds = array<i64: 1, 128>}, {transform_indices = @transform_4, window_bounds = array<i64: 8, 128>}]} {
    %c0_i32 = arith.constant 0 : i32
    %0 = arith.cmpi eq, %arg2, %c0_i32 : i32
    %1 = arith.extui %0 : i1 to i32
    %c0_i32_0 = arith.constant 0 : i32
    %2 = arith.cmpi ne, %1, %c0_i32_0 : i32
    scf.if %2 {
      %cst_10 = arith.constant 0.000000e+00 : f32
      %12 = vector.broadcast %cst_10 : f32 to vector<8x128xf32>
      %c0_11 = arith.constant 0 : index
      %c0_12 = arith.constant 0 : index
      %13 = vector.load %arg7[%c0_11, %c0_12] : memref<8x128xf32, #tpu.memory_space<vmem>>, vector<8x128xf32>
      tpu.vector_store %arg7[%c0_11, %c0_12], %12 {strides = array<i32>} : memref<8x128xf32, #tpu.memory_space<vmem>>, vector<8x128xf32>,
    } else {
    }
    %c0 = arith.constant 0 : index
    %c0_1 = arith.constant 0 : index
    %3 = vector.load %arg7[%c0, %c0_1] : memref<8x128xf32, #tpu.memory_space<vmem>>, vector<8x128xf32>
    %c0_2 = arith.constant 0 : index
    %c0_3 = arith.constant 0 : index
    %4 = vector.load %arg3[%c0_2, %c0_3] : memref<8x128xf32, #tpu.memory_space<vmem>>, vector<8x128xf32>
    %c0_4 = arith.constant 0 : index
    %c0_5 = arith.constant 0 : index
    %5 = vector.load %arg4[%c0_4, %c0_5] : memref<128x128xf32, #tpu.memory_space<vmem>>, vector<128x128xf32>
    %cst = arith.constant dense<0.000000e+00> : vector<8x128xf32>
    %6 = tpu.matmul %4, %5, %cst {dimension_numbers = #tpu.dot_dimension_numbers<[1], [0], [0], [1], [0, 0, 1, 1], [], []>} : vector<8x128xf32>, vector<128x128xf32>, vector<8x128xf32> -> vector<8x128xf32>
    %7 = arith.addf %3, %6 : vector<8x128xf32>
    %c0_6 = arith.constant 0 : index
    %c0_7 = arith.constant 0 : index
    %8 = vector.load %arg7[%c0_6, %c0_7] : memref<8x128xf32, #tpu.memory_space<vmem>>, vector<8x128xf32>
    tpu.vector_store %arg7[%c0_6, %c0_7], %7 {strides = array<i32>} : memref<8x128xf32, #tpu.memory_space<vmem>>, vector<8x128xf32>,
    %c0_i32_8 = arith.constant 0 : i32
    %9 = arith.cmpi eq, %arg2, %c0_i32_8 : i32
    %10 = arith.extui %9 : i1 to i32
    %c0_i32_9 = arith.constant 0 : i32
    %11 = arith.cmpi ne, %10, %c0_i32_9 : i32
    scf.if %11 {
      %c0_10 = arith.constant 0 : index
      %c0_11 = arith.constant 0 : index
      %12 = vector.load %arg7[%c0_10, %c0_11] : memref<8x128xf32, #tpu.memory_space<vmem>>, vector<8x128xf32>
      %c0_12 = arith.constant 0 : index
      %c0_13 = arith.constant 0 : index
      %13 = vector.load %arg5[%c0_12, %c0_13] : memref<1x128xf32, #tpu.memory_space<vmem>>, vector<1x128xf32>
      %14 = vector.broadcast %13 : vector<1x128xf32> to vector<8x128xf32>
      %15 = arith.mulf %12, %14 : vector<8x128xf32>
      %c0_14 = arith.constant 0 : index
      %c0_15 = arith.constant 0 : index
      %16 = vector.load %arg6[%c0_14, %c0_15] : memref<1x128xf32, #tpu.memory_space<vmem>>, vector<1x128xf32>
      %17 = vector.broadcast %16 : vector<1x128xf32> to vector<8x128xf32>
      %18 = arith.addf %15, %17 : vector<8x128xf32>
      %cst_16 = arith.constant 5.000000e-01 : f32
      %19 = vector.broadcast %cst_16 : f32 to vector<8x128xf32>
      %20 = arith.mulf %19, %18 : vector<8x128xf32>
      %cst_17 = arith.constant 0.707106769 : f32
      %21 = vector.broadcast %cst_17 : f32 to vector<8x128xf32>
      %22 = arith.mulf %18, %21 : vector<8x128xf32>
      %23 = math.erf %22 : vector<8x128xf32>
      %cst_18 = arith.constant 1.000000e+00 : f32
      %24 = vector.broadcast %cst_18 : f32 to vector<8x128xf32>
      %25 = arith.addf %24, %23 : vector<8x128xf32>
      %26 = arith.mulf %20, %25 : vector<8x128xf32>
      %c0_19 = arith.constant 0 : index
      %c0_20 = arith.constant 0 : index
      %27 = vector.load %arg7[%c0_19, %c0_20] : memref<8x128xf32, #tpu.memory_space<vmem>>, vector<8x128xf32>
      tpu.vector_store %arg7[%c0_19, %c0_20], %26 {strides = array<i32>} : memref<8x128xf32, #tpu.memory_space<vmem>>, vector<8x128xf32>,
    } else {
    }
    return
  }
  func.func @transform_0(%arg0: i32, %arg1: i32, %arg2: i32) -> (i32, i32) {
    %c0_i32 = arith.constant 0 : i32
    return %arg0, %arg2 : i32, i32
  }
  func.func @transform_1(%arg0: i32, %arg1: i32, %arg2: i32) -> (i32, i32) {
    %c0_i32 = arith.constant 0 : i32
    return %arg2, %arg1 : i32, i32
  }
  func.func @transform_2(%arg0: i32, %arg1: i32, %arg2: i32) -> (i32, i32) {
    %c0_i32 = arith.constant 0 : i32
    %c0_i32_0 = arith.constant 0 : i32
    return %c0_i32, %arg1 : i32, i32
  }
  func.func @transform_3(%arg0: i32, %arg1: i32, %arg2: i32) -> (i32, i32) {
    %c0_i32 = arith.constant 0 : i32
    %c0_i32_0 = arith.constant 0 : i32
    return %c0_i32, %arg1 : i32, i32
  }
  func.func @transform_4(%arg0: i32, %arg1: i32, %arg2: i32) -> (i32, i32) {
    %c0_i32 = arith.constant 0 : i32
    return %arg0, %arg1 : i32, i32
  }
}

</mosaic_0001>

<llo_original>
// kernel: tpu_custom_call.1
$region0: #{tpu_custom_call.1}
  #allocation0 [shape = 'u32[]', space=smem, size = 0x4, offset = 0x4, fixed_abs, tag = 'smem constant byte address 0x4 - core index']
  #allocation1 [shape = 'u32[144,128]{1,0:T(1,128)}', space=vmem, size = 0x12000, scoped, tag = 'internal scratch']
  %s0 = inlined_call_operand.hbm [shape: f32[8,128], index: 0, kind: input, shape index: {}]
  %s1 = inlined_call_operand.hbm [shape: f32[128,128], index: 1, kind: input, shape index: {}]
  %s2 = inlined_call_operand.vmem [shape: f32[1,128], index: 2, kind: input, shape index: {}]
  %s3 = inlined_call_operand.vmem [shape: f32[1,128], index: 3, kind: input, shape index: {}]
  %s4 = inlined_call_operand.hbm [shape: f32[8,128], index: 4, kind: output, shape index: {}]
  %s5 = sld [smem:[#allocation0]]
  $region42: #{tpu_custom_call.1} parent=0
    _
  %s7 = ssub.s32 1, %s5
  %s8 = scalar_select 0, %s7, %s5
  $region1: #{tpu_custom_call.1} parent=0
    #allocation2 [shape = 'u8[4096]{0}', space=vmem, size = 0x1000, scoped, tag = 'input window, operand 0, single buffered']
    #allocation3 [shape = 's32[1]{0}', space=sflag, size = 0x4, scoped, tag = 'scoped memory for tpu_custom_call.1']
    #allocation4 [shape = 's32[1]{0}', space=sflag, size = 0x4, scoped, tag = 'scoped memory for tpu_custom_call.1']
    #allocation5 [shape = 'u8[65536]{0}', space=vmem, size = 0x10000, scoped, tag = 'input window, operand 1, single buffered']
    #allocation6 [shape = 's32[1]{0}', space=sflag, size = 0x4, scoped, tag = 'scoped memory for tpu_custom_call.1']
    #allocation7 [shape = 'u8[4096]{0}', space=vmem, size = 0x1000, scoped, tag = 'output window, operand 0, single buffered']
    %9 = vsyncpa [#allocation3], 0
    %10 = vsyncpa [#allocation6], 0
    %11 = vsyncpa [#allocation4], 0
    // Predicated region
    $region2: #{tpu_custom_call.1} parent=1 // pred_check
      _
    $region3: #{tpu_custom_call.1} parent=1 // pred_check_branch
      %13 = sbr.rel (0) target = $region5
    $region4: #{tpu_custom_call.1} parent=1 // pred_region
      %s15 = ssub.s32 128, 128
      %16 = vsyncadd [#allocation3], %s15
      %s18 = sshll.u32 [#allocation2], 4
      %s19 = int_to_ptr.vmem [resolvable:$true] %s18
      %21 = dma.hbm_to_vmem [thread:$0]  %s0, 128, %s19, [#allocation3]
    $region5: #{tpu_custom_call.1} parent=1 // pred_fallthru
      _
    // Predicated region
    $region6: #{tpu_custom_call.1} parent=1 // pred_check
      _
    $region7: #{tpu_custom_call.1} parent=1 // pred_check_branch
      %23 = sbr.rel (0) target = $region9
    $region8: #{tpu_custom_call.1} parent=1 // pred_region
      %s25 = ssub.s32 2048, 2048
      %26 = vsyncadd [#allocation6], %s25
      %s27 = sshll.u32 [#allocation5], 4
      %s28 = int_to_ptr.vmem [resolvable:$true] %s27
      %33 = dma.hbm_to_vmem [thread:$0]  %s1, 2048, %s28, [#allocation6], 128, 128, 8
    $region9: #{tpu_custom_call.1} parent=1 // pred_fallthru
      _
    // Predicated region
    $region10: #{tpu_custom_call.1} parent=1 // pred_check
      _
    $region11: #{tpu_custom_call.1} parent=1 // pred_check_branch
      %35 = sbr.rel (0) target = $region13
    $region12: #{tpu_custom_call.1} parent=1 // pred_region
      _
    $region13: #{tpu_custom_call.1} parent=1 // pred_fallthru
      _
    // Predicated region
    $region14: #{tpu_custom_call.1} parent=1 // pred_check
      _
    $region15: #{tpu_custom_call.1} parent=1 // pred_check_branch
      %37 = sbr.rel (0) target = $region17
    $region16: #{tpu_custom_call.1} parent=1 // pred_region
      _
    $region17: #{tpu_custom_call.1} parent=1 // pred_fallthru
      _
    // Predicated region
    $region18: #{tpu_custom_call.1} parent=1 // pred_check
      _
    $region19: #{tpu_custom_call.1} parent=1 // pred_check_branch
      %39 = sbr.rel (0) target = $region21
    $region20: #{tpu_custom_call.1} parent=1 // pred_region
      %40 = dma.done [#allocation3], 128
    $region21: #{tpu_custom_call.1} parent=1 // pred_fallthru
      _
    // Predicated region
    $region22: #{tpu_custom_call.1} parent=1 // pred_check
      _
    $region23: #{tpu_custom_call.1} parent=1 // pred_check_branch
      %42 = sbr.rel (0) target = $region25
    $region24: #{tpu_custom_call.1} parent=1 // pred_region
      %43 = dma.done [#allocation6], 2048
    $region25: #{tpu_custom_call.1} parent=1 // pred_fallthru
      _
    %p44 = scmp.eq.s32.totalorder 0, 0
    // Predicated region
    $region26: #{tpu_custom_call.1} parent=1 // pred_check
      %p45 = pneg %p44
    $region27: #{tpu_custom_call.1} parent=1 // pred_check_branch
      %47 = sbr.rel (%p45) target = $region29
    $region28: #{tpu_custom_call.1} parent=1 // pred_region
      %48 = vst [vmem:[#allocation7] sm:$0xff] 0.0
    $region29: #{tpu_custom_call.1} parent=1 // pred_fallthru
      _
    %v49 = vld [vmem:[#allocation7] sm:$0xff]
    %v50 = vld [vmem:[#allocation2] sm:$0xff]
    %v51 = vld [vmem:[#allocation5] sm:$0xff]
    %v52 = vld [vmem:[#allocation5 + $0x8] sm:$0xff]
    %v53 = vld [vmem:[#allocation5 + $0x10] sm:$0xff]
    %v54 = vld [vmem:[#allocation5 + $0x18] sm:$0xff]
    %v55 = vld [vmem:[#allocation5 + $0x20] sm:$0xff]
    %v56 = vld [vmem:[#allocation5 + $0x28] sm:$0xff]
    %v57 = vld [vmem:[#allocation5 + $0x30] sm:$0xff]
    %v58 = vld [vmem:[#allocation5 + $0x38] sm:$0xff]
    %v59 = vld [vmem:[#allocation5 + $0x40] sm:$0xff]
    %v60 = vld [vmem:[#allocation5 + $0x48] sm:$0xff]
    %v61 = vld [vmem:[#allocation5 + $0x50] sm:$0xff]
    %v62 = vld [vmem:[#allocation5 + $0x58] sm:$0xff]
    %v63 = vld [vmem:[#allocation5 + $0x60] sm:$0xff]
    %v64 = vld [vmem:[#allocation5 + $0x68] sm:$0xff]
    %v65 = vld [vmem:[#allocation5 + $0x70] sm:$0xff]
    %v66 = vld [vmem:[#allocation5 + $0x78] sm:$0xff]
    %67 = vmatprep.subr.mxu0 0.0
    %68 = vmatpush1.msra.mxu0 %v51
    %69 = vmatprep.subr.mxu0 0.0
    %70 = vmatpush1.msra.mxu0 %v52
    %71 = vmatprep.subr.mxu0 0.0
    %72 = vmatpush1.msra.mxu0 %v53
    %73 = vmatprep.subr.mxu0 0.0
    %74 = vmatpush1.msra.mxu0 %v54
    %75 = vmatprep.subr.mxu0 0.0
    %76 = vmatpush1.msra.mxu0 %v55
    %77 = vmatprep.subr.mxu0 0.0
    %78 = vmatpush1.msra.mxu0 %v56
    %79 = vmatprep.subr.mxu0 0.0
    %80 = vmatpush1.msra.mxu0 %v57
    %81 = vmatprep.subr.mxu0 0.0
    %82 = vmatpush1.msra.mxu0 %v58
    %83 = vmatprep.subr.mxu0 0.0
    %84 = vmatpush1.msra.mxu0 %v59
    %85 = vmatprep.subr.mxu0 0.0
    %86 = vmatpush1.msra.mxu0 %v60
    %87 = vmatprep.subr.mxu0 0.0
    %88 = vmatpush1.msra.mxu0 %v61
    %89 = vmatprep.subr.mxu0 0.0
    %90 = vmatpush1.msra.mxu0 %v62
    %91 = vmatprep.subr.mxu0 0.0
    %92 = vmatpush1.msra.mxu0 %v63
    %93 = vmatprep.subr.mxu0 0.0
    %94 = vmatpush1.msra.mxu0 %v64
    %95 = vmatprep.subr.mxu0 0.0
    %96 = vmatpush1.msra.mxu0 %v65
    %97 = vmatprep.subr.mxu0 0.0
    %98 = vmatpush1.msra.mxu0 %v66
    %99 = vmatprep.subr.mxu0 0.0
    %100 = vmatpush1.msra.mxu0 0.0
    %101 = vmatprep.subr.mxu0 0.0
    %102 = vmatpush1.msra.mxu0 0.0
    %103 = vmatprep.subr.mxu0 0.0
    %104 = vmatpush1.msra.mxu0 0.0
    %105 = vmatprep.subr.mxu0 0.0
    %106 = vmatpush1.msra.mxu0 0.0
    %107 = vmatprep.subr.mxu0 0.0
    %108 = vmatpush1.msra.mxu0 0.0
    %109 = vmatprep.subr.mxu0 0.0
    %110 = vmatpush1.msra.mxu0 0.0
    %111 = vmatprep.subr.mxu0 0.0
    %112 = vmatpush1.msra.mxu0 0.0
    %113 = vmatprep.subr.mxu0 0.0
    %114 = vmatpush1.msra.mxu0 0.0
    %115 = vmatprep.subr.mxu0 0.0
    %116 = vmatpush1.msra.mxu0 0.0
    %117 = vmatprep.subr.mxu0 0.0
    %118 = vmatpush1.msra.mxu0 0.0
    %119 = vmatprep.subr.mxu0 0.0
    %120 = vmatpush1.msra.mxu0 0.0
    %121 = vmatprep.subr.mxu0 0.0
    %122 = vmatpush1.msra.mxu0 0.0
    %123 = vmatprep.subr.mxu0 0.0
    %124 = vmatpush1.msra.mxu0 0.0
    %125 = vmatprep.subr.mxu0 0.0
    %126 = vmatpush1.msra.mxu0 0.0
    %127 = vmatprep.subr.mxu0 0.0
    %128 = vmatpush1.msra.mxu0 0.0
    %129 = vmatprep.subr.mxu0 0.0
    %130 = vmatpush1.msra.mxu0 0.0
    %131 = vmatprep.mubr.f32.mxu0 0.0
    %132 = vmatmul.mubr.f32.gmra.mrb[0].mxu0 %v50
    %v133 = vpop.f32.mrb[0].mxu0
    %v134 = vadd.f32 0.0, %v133
    %v135 = vpop.f32.mrb[0].mxu0
    %136 = vdwg.mxu0
    %v137 = vadd.f32 %v49, %v134
    %138 = vst [vmem:[#allocation7] sm:$0xff] %v137
    // Predicated region
    $region30: #{tpu_custom_call.1} parent=1 // pred_check
      %p139 = pneg %p44
    $region31: #{tpu_custom_call.1} parent=1 // pred_check_branch
      %141 = sbr.rel (%p139) target = $region33
    $region32: #{tpu_custom_call.1} parent=1 // pred_region
      %v142 = vld [vmem:[#allocation7] sm:$0xff]
      %v143 = vld [vmem:[%s2] sm:$0x1]
      %v145 = vlaneseq
      %v146 = vshrl.u32 %v145, 7
      %v147 = vsub.s32 0, %v146
      %v148 = vrot.slane %v143, %v147
      %v150 = vmul.f32 %v142, %v148
      %v151 = vld [vmem:[%s3] sm:$0x1]
      %v153 = vlaneseq
      %v154 = vshrl.u32 %v153, 7
      %v155 = vsub.s32 0, %v154
      %v156 = vrot.slane %v151, %v155
      %v158 = vadd.f32 %v150, %v156
      %v159 = vmul.f32 %v158, 0.5
      %v160 = vmul.f32 %v158, 0.70710677
      %v161 = verf.f32.pop %v160
      %v162 = vadd.f32 %v161, 1.0
      %v163 = vmul.f32 %v159, %v162
      %164 = vst [vmem:[#allocation7] sm:$0xff] %v163
    $region33: #{tpu_custom_call.1} parent=1 // pred_fallthru
      _
    // Predicated region
    $region34: #{tpu_custom_call.1} parent=1 // pred_check
      _
    $region35: #{tpu_custom_call.1} parent=1 // pred_check_branch
      %166 = sbr.rel (0) target = $region37
    $region36: #{tpu_custom_call.1} parent=1 // pred_region
      %s168 = ssub.s32 128, 128
      %169 = vsyncadd [#allocation4], %s168
      %s171 = sshll.u32 [#allocation7], 4
      %s172 = int_to_ptr.vmem [resolvable:$true] %s171
      %174 = dma.vmem_to_hbm [thread:$0]  %s172, 128, %s4, [#allocation4]
    $region37: #{tpu_custom_call.1} parent=1 // pred_fallthru
      _
    // Predicated region
    $region38: #{tpu_custom_call.1} parent=1 // pred_check
      _
    $region39: #{tpu_custom_call.1} parent=1 // pred_check_branch
      %176 = sbr.rel (0) target = $region41
    $region40: #{tpu_custom_call.1} parent=1 // pred_region
      %177 = dma.done [#allocation4], 128
    $region41: #{tpu_custom_call.1} parent=1 // pred_fallthru
      _
    %178 = vsyncpa [#allocation3], 1
    %179 = vsyncpa [#allocation6], 1
    %180 = vsyncpa [#allocation4], 1

</llo_original>
